<compile_context>
chip_gen: v5e
topology: v5e:2x2
jax: 0.10.0
libtpu: 0.0.40
codegen_flags: <defaults>
</compile_context>

<pallas_src>
import functools

import jax
import jax.numpy as jnp
from jax.experimental import pallas as pl
from jax.experimental.pallas import tpu as pltpu


def _mlp_kernel(x_ref, w1_ref, b1_ref, w2_ref, b2_ref, w3_ref, b3_ref, o_ref):
    """One lane-tile of the full 3-layer MLP, feature-major.

    x_ref : [2, T]    x^T tile (T = tile_n; batch on the lane axis)
    w1_ref: [64, 2]   W1^T      b1_ref: [64, 1]
    w2_ref: [64, 64]  W2^T      b2_ref: [64, 1]
    w3_ref: [2, 64]   W3^T      b3_ref: [2, 1]
    o_ref : [2, T]    y^T tile
    """
    x0 = x_ref[0:1, :]                       # [1, T]
    x1 = x_ref[1:2, :]                       # [1, T]

    # ---- Layer 1 (in=2): two VPU broadcast-FMAs, exact f32 -----------------
    h1 = w1_ref[:, 0:1] * x0 + w1_ref[:, 1:2] * x1 + b1_ref[...]   # [64, T]
    h1 = jnp.tanh(h1)

    # ---- Layer 2 (64x64): f32 matmul, f32 accumulation ----------------------
    h2 = jnp.dot(w2_ref[...], h1,
                 preferred_element_type=jnp.float32) + b2_ref[...]
    h2 = jnp.tanh(h2)

    # ---- Layer 3 (out=2): f32 matmul, f32 accumulation ----------------------
    out = jnp.dot(w3_ref[...], h2,
                  preferred_element_type=jnp.float32) + b3_ref[...]
    o_ref[...] = out.astype(o_ref.dtype)


@functools.partial(jax.jit, static_argnames=("tile_n",))
def area_preserving_nn_forward(x, params, tile_n=4096):
    """x: [N, 2] float32 -> [N, 2] float32."""
    w1, b1, w2, b2, w3, b3 = params
    n, d_in = x.shape
    assert d_in == 2

    # Feature-major (lane-dense) views.  Layout plumbing on tiny-width tensors;
    # a real pipeline would keep the data feature-major end-to-end.
    xt = x.T                       # [2, N]
    w1t = w1.T                     # [64, 2]
    w2t = w2.T                     # [64, 64]
    w3t = w3.T                     # [2, 64]
    b1c = b1.reshape(64, 1)
    b2c = b2.reshape(64, 1)
    b3c = b3.reshape(2, 1)

    # Lane tile: large enough to amortize per-step overhead (sweet spot 2K-8K),
    # clamped to the 128-aligned batch so tiny inputs don't waste VMEM.
    tile = min(tile_n, max(128, pl.cdiv(n, 128) * 128))
    grid = (pl.cdiv(n, tile),)

    out_t = pl.pallas_call(
        _mlp_kernel,
        out_shape=jax.ShapeDtypeStruct((2, n), jnp.float32),
        grid_spec=pltpu.PrefetchScalarGridSpec(
            num_scalar_prefetch=0,
            grid=grid,
            in_specs=[
                pl.BlockSpec((2, tile), lambda i: (0, i)),    # x^T tile
                pl.BlockSpec((64, 2), lambda i: (0, 0)),      # W1^T
                pl.BlockSpec((64, 1), lambda i: (0, 0)),      # b1
                pl.BlockSpec((64, 64), lambda i: (0, 0)),     # W2^T
                pl.BlockSpec((64, 1), lambda i: (0, 0)),      # b2
                pl.BlockSpec((2, 64), lambda i: (0, 0)),      # W3^T
                pl.BlockSpec((2, 1), lambda i: (0, 0)),       # b3
            ],
            out_specs=pl.BlockSpec((2, tile), lambda i: (0, i)),
        ),
        compiler_params=pltpu.CompilerParams(
            dimension_semantics=("parallel",),      # megacore / v7x 2-TC sharding
            vmem_limit_bytes=32 * 1024 * 1024,      # headroom for large lane tiles
        ),
    )(xt, w1t, b1c, w2t, b2c, w3t, b3c)

    return out_t.T


def init_params(key):
    """PyTorch nn.Linear default init: U[-1/sqrt(fan_in), 1/sqrt(fan_in)]."""
    ks = jax.random.split(key, 6)

    def uniform(k, shape, fan_in):
        bound = 1.0 / jnp.sqrt(float(fan_in))
        return jax.random.uniform(k, shape, jnp.float32, -bound, bound)

    w1 = uniform(ks[0], (2, 64), 2)
    b1 = uniform(ks[1], (64,), 2)
    w2 = uniform(ks[2], (64, 64), 64)
    b2 = uniform(ks[3], (64,), 64)
    w3 = uniform(ks[4], (64, 2), 64)
    b3 = uniform(ks[5], (2,), 64)
    return (w1, b1, w2, b2, w3, b3)


def reference_forward(x, params):
    w1, b1, w2, b2, w3, b3 = params
    h = jnp.tanh(x @ w1 + b1)
    h = jnp.tanh(h @ w2 + b2)
    return h @ w3 + b3


if __name__ == "__main__":
    key = jax.random.PRNGKey(0)
    pkey, xkey = jax.random.split(key)
    params = init_params(pkey)

    # Small batch of 2-D points (also exercises the ragged / partial lane block).
    n = 8
    x = jax.random.normal(xkey, (n, 2), dtype=jnp.float32)

    y = jax.block_until_ready(area_preserving_nn_forward(x, params))
    y_ref = reference_forward(x, params)

    assert y.shape == (n, 2)
    # Everything is f32 now -> tight tolerance vs the pure-JAX reference.
    assert jnp.allclose(y, y_ref, atol=1e-4, rtol=1e-4), float(
        jnp.max(jnp.abs(y - y_ref)))

    print("KERNEL_OK")
</pallas_src>

<mosaic_0001>
module attributes {stable_mosaic.version = 11 : i64} {
  func.func @_mlp_kernel(%arg0: i32, %arg1: memref<2x128xf32, #tpu.memory_space<vmem>>, %arg2: memref<64x2xf32, #tpu.memory_space<vmem>>, %arg3: memref<64x1xf32, #tpu.memory_space<vmem>>, %arg4: memref<64x64xf32, #tpu.memory_space<vmem>>, %arg5: memref<64x1xf32, #tpu.memory_space<vmem>>, %arg6: memref<2x64xf32, #tpu.memory_space<vmem>>, %arg7: memref<2x1xf32, #tpu.memory_space<vmem>>, %arg8: memref<2x128xf32, #tpu.memory_space<vmem>>) attributes {dimension_semantics = [#tpu.dimension_semantics<parallel>], iteration_bounds = array<i64: 1>, scalar_prefetch = 0 : i64, scratch_operands = 0 : i64, tpu.core_type = #tpu.core_type<tc>, window_params = [{transform_indices = @transform_0, window_bounds = array<i64: 2, 128>}, {pipeline_mode = #tpu.pipeline_mode<synchronous>, transform_indices = @transform_1, window_bounds = array<i64: 64, 2>}, {pipeline_mode = #tpu.pipeline_mode<synchronous>, transform_indices = @transform_2, window_bounds = array<i64: 64, 1>}, {pipeline_mode = #tpu.pipeline_mode<synchronous>, transform_indices = @transform_3, window_bounds = array<i64: 64, 64>}, {pipeline_mode = #tpu.pipeline_mode<synchronous>, transform_indices = @transform_4, window_bounds = array<i64: 64, 1>}, {pipeline_mode = #tpu.pipeline_mode<synchronous>, transform_indices = @transform_5, window_bounds = array<i64: 2, 64>}, {pipeline_mode = #tpu.pipeline_mode<synchronous>, transform_indices = @transform_6, window_bounds = array<i64: 2, 1>}, {transform_indices = @transform_7, window_bounds = array<i64: 2, 128>}]} {
    %c0 = arith.constant 0 : index
    %c0_0 = arith.constant 0 : index
    %0 = vector.load %arg1[%c0, %c0_0] : memref<2x128xf32, #tpu.memory_space<vmem>>, vector<1x128xf32>
    %c1 = arith.constant 1 : index
    %c0_1 = arith.constant 0 : index
    %1 = vector.load %arg1[%c1, %c0_1] : memref<2x128xf32, #tpu.memory_space<vmem>>, vector<1x128xf32>
    %c0_2 = arith.constant 0 : index
    %c0_3 = arith.constant 0 : index
    %2 = vector.load %arg2[%c0_2, %c0_3] : memref<64x2xf32, #tpu.memory_space<vmem>>, vector<64x1xf32>
    %3 = vector.broadcast %2 : vector<64x1xf32> to vector<64x128xf32>
    %4 = vector.broadcast %0 : vector<1x128xf32> to vector<64x128xf32>
    %5 = arith.mulf %3, %4 : vector<64x128xf32>
    %c0_4 = arith.constant 0 : index
    %c1_5 = arith.constant 1 : index
    %6 = vector.load %arg2[%c0_4, %c1_5] : memref<64x2xf32, #tpu.memory_space<vmem>>, vector<64x1xf32>
    %7 = vector.broadcast %6 : vector<64x1xf32> to vector<64x128xf32>
    %8 = vector.broadcast %1 : vector<1x128xf32> to vector<64x128xf32>
    %9 = arith.mulf %7, %8 : vector<64x128xf32>
    %10 = arith.addf %5, %9 : vector<64x128xf32>
    %c0_6 = arith.constant 0 : index
    %c0_7 = arith.constant 0 : index
    %11 = vector.load %arg3[%c0_6, %c0_7] : memref<64x1xf32, #tpu.memory_space<vmem>>, vector<64x1xf32>
    %12 = vector.broadcast %11 : vector<64x1xf32> to vector<64x128xf32>
    %13 = arith.addf %10, %12 : vector<64x128xf32>
    %14 = math.tanh %13 : vector<64x128xf32>
    %c0_8 = arith.constant 0 : index
    %c0_9 = arith.constant 0 : index
    %15 = vector.load %arg4[%c0_8, %c0_9] : memref<64x64xf32, #tpu.memory_space<vmem>>, vector<64x64xf32>
    %cst = arith.constant dense<0.000000e+00> : vector<64x128xf32>
    %16 = tpu.matmul %15, %14, %cst {dimension_numbers = #tpu.dot_dimension_numbers<[1], [0], [0], [1], [0, 0, 1, 1], [], []>} : vector<64x64xf32>, vector<64x128xf32>, vector<64x128xf32> -> vector<64x128xf32>
    %c0_10 = arith.constant 0 : index
    %c0_11 = arith.constant 0 : index
    %17 = vector.load %arg5[%c0_10, %c0_11] : memref<64x1xf32, #tpu.memory_space<vmem>>, vector<64x1xf32>
    %18 = vector.broadcast %17 : vector<64x1xf32> to vector<64x128xf32>
    %19 = arith.addf %16, %18 : vector<64x128xf32>
    %20 = math.tanh %19 : vector<64x128xf32>
    %c0_12 = arith.constant 0 : index
    %c0_13 = arith.constant 0 : index
    %21 = vector.load %arg6[%c0_12, %c0_13] : memref<2x64xf32, #tpu.memory_space<vmem>>, vector<2x64xf32>
    %cst_14 = arith.constant dense<0.000000e+00> : vector<2x128xf32>
    %22 = tpu.matmul %21, %20, %cst_14 {dimension_numbers = #tpu.dot_dimension_numbers<[1], [0], [0], [1], [0, 0, 1, 1], [], []>} : vector<2x64xf32>, vector<64x128xf32>, vector<2x128xf32> -> vector<2x128xf32>
    %c0_15 = arith.constant 0 : index
    %c0_16 = arith.constant 0 : index
    %23 = vector.load %arg7[%c0_15, %c0_16] : memref<2x1xf32, #tpu.memory_space<vmem>>, vector<2x1xf32>
    %24 = vector.broadcast %23 : vector<2x1xf32> to vector<2x128xf32>
    %25 = arith.addf %22, %24 : vector<2x128xf32>
    %c0_17 = arith.constant 0 : index
    %c0_18 = arith.constant 0 : index
    %26 = vector.load %arg8[%c0_17, %c0_18] : memref<2x128xf32, #tpu.memory_space<vmem>>, vector<2x128xf32>
    tpu.vector_store %arg8[%c0_17, %c0_18], %25 {strides = array<i32>} : memref<2x128xf32, #tpu.memory_space<vmem>>, vector<2x128xf32>,
    return
  }
  func.func @transform_0(%arg0: i32) -> (i32, i32) {
    %c0_i32 = arith.constant 0 : i32
    %c0_i32_0 = arith.constant 0 : i32
    return %c0_i32, %arg0 : i32, i32
  }
  func.func @transform_1(%arg0: i32) -> (i32, i32) {
    %c0_i32 = arith.constant 0 : i32
    %c0_i32_0 = arith.constant 0 : i32
    %c0_i32_1 = arith.constant 0 : i32
    return %c0_i32, %c0_i32_0 : i32, i32
  }
  func.func @transform_2(%arg0: i32) -> (i32, i32) {
    %c0_i32 = arith.constant 0 : i32
    %c0_i32_0 = arith.constant 0 : i32
    %c0_i32_1 = arith.constant 0 : i32
    return %c0_i32, %c0_i32_0 : i32, i32
  }
  func.func @transform_3(%arg0: i32) -> (i32, i32) {
    %c0_i32 = arith.constant 0 : i32
    %c0_i32_0 = arith.constant 0 : i32
    %c0_i32_1 = arith.constant 0 : i32
    return %c0_i32, %c0_i32_0 : i32, i32
  }
  func.func @transform_4(%arg0: i32) -> (i32, i32) {
    %c0_i32 = arith.constant 0 : i32
    %c0_i32_0 = arith.constant 0 : i32
    %c0_i32_1 = arith.constant 0 : i32
    return %c0_i32, %c0_i32_0 : i32, i32
  }
  func.func @transform_5(%arg0: i32) -> (i32, i32) {
    %c0_i32 = arith.constant 0 : i32
    %c0_i32_0 = arith.constant 0 : i32
    %c0_i32_1 = arith.constant 0 : i32
    return %c0_i32, %c0_i32_0 : i32, i32
  }
  func.func @transform_6(%arg0: i32) -> (i32, i32) {
    %c0_i32 = arith.constant 0 : i32
    %c0_i32_0 = arith.constant 0 : i32
    %c0_i32_1 = arith.constant 0 : i32
    return %c0_i32, %c0_i32_0 : i32, i32
  }
  func.func @transform_7(%arg0: i32) -> (i32, i32) {
    %c0_i32 = arith.constant 0 : i32
    %c0_i32_0 = arith.constant 0 : i32
    return %c0_i32, %arg0 : i32, i32
  }
}

</mosaic_0001>

<llo_original>
// kernel: area_preserving_nn_forward.1
$region0: #{area_preserving_nn_forward.1}
  #allocation0 [shape = 'u32[]', space=smem, size = 0x4, offset = 0x4, fixed_abs, tag = 'smem constant byte address 0x4 - core index']
  #allocation1 [shape = 'u32[72,128]{1,0:T(1,128)}', space=vmem, size = 0x9000, scoped, tag = 'internal scratch']
  %s0 = inlined_call_operand.vmem [shape: f32[2,8], index: 0, kind: input, shape index: {}]
  %s1 = inlined_call_operand.vmem [shape: f32[64,2], index: 1, kind: input, shape index: {}]
  %s2 = inlined_call_operand.vmem [shape: f32[64,1], index: 2, kind: input, shape index: {}]
  %s3 = inlined_call_operand.vmem [shape: f32[64,64], index: 3, kind: input, shape index: {}]
  %s4 = inlined_call_operand.vmem [shape: f32[64,1], index: 4, kind: input, shape index: {}]
  %s5 = inlined_call_operand.vmem [shape: f32[2,64], index: 5, kind: input, shape index: {}]
  %s6 = inlined_call_operand.vmem [shape: f32[2,1], index: 6, kind: input, shape index: {}]
  %s7 = inlined_call_operand.hbm [shape: f32[2,8], index: 7, kind: output, shape index: {}]
  %s8 = sld [smem:[#allocation0]]
  $region38: #{area_preserving_nn_forward.1} parent=0
    _
  %s10 = ssub.s32 1, %s8
  %s11 = scalar_select 0, %s10, %s8
  $region1: #{area_preserving_nn_forward.1} parent=0
    #allocation2 [shape = 'u8[1024]{0}', space=vmem, size = 0x400, scoped, tag = 'output window, operand 0, single buffered']
    #allocation3 [shape = 's32[1]{0}', space=sflag, size = 0x4, scoped, tag = 'scoped memory for area_preserving_nn_forward.1']
    %12 = vsyncpa [#allocation3], 0
    // Predicated region
    $region2: #{area_preserving_nn_forward.1} parent=1 // pred_check
      _
    $region3: #{area_preserving_nn_forward.1} parent=1 // pred_check_branch
      %14 = sbr.rel (0) target = $region5
    $region4: #{area_preserving_nn_forward.1} parent=1 // pred_region
      _
    $region5: #{area_preserving_nn_forward.1} parent=1 // pred_fallthru
      _
    // Predicated region
    $region6: #{area_preserving_nn_forward.1} parent=1 // pred_check
      _
    $region7: #{area_preserving_nn_forward.1} parent=1 // pred_check_branch
      %16 = sbr.rel (0) target = $region9
    $region8: #{area_preserving_nn_forward.1} parent=1 // pred_region
      _
    $region9: #{area_preserving_nn_forward.1} parent=1 // pred_fallthru
      _
    // Predicated region
    $region10: #{area_preserving_nn_forward.1} parent=1 // pred_check
      _
    $region11: #{area_preserving_nn_forward.1} parent=1 // pred_check_branch
      %18 = sbr.rel (0) target = $region13
    $region12: #{area_preserving_nn_forward.1} parent=1 // pred_region
      _
    $region13: #{area_preserving_nn_forward.1} parent=1 // pred_fallthru
      _
    // Predicated region
    $region14: #{area_preserving_nn_forward.1} parent=1 // pred_check
      _
    $region15: #{area_preserving_nn_forward.1} parent=1 // pred_check_branch
      %20 = sbr.rel (0) target = $region17
    $region16: #{area_preserving_nn_forward.1} parent=1 // pred_region
      _
    $region17: #{area_preserving_nn_forward.1} parent=1 // pred_fallthru
      _
    // Predicated region
    $region18: #{area_preserving_nn_forward.1} parent=1 // pred_check
      _
    $region19: #{area_preserving_nn_forward.1} parent=1 // pred_check_branch
      %22 = sbr.rel (0) target = $region21
    $region20: #{area_preserving_nn_forward.1} parent=1 // pred_region
      _
    $region21: #{area_preserving_nn_forward.1} parent=1 // pred_fallthru
      _
    // Predicated region
    $region22: #{area_preserving_nn_forward.1} parent=1 // pred_check
      _
    $region23: #{area_preserving_nn_forward.1} parent=1 // pred_check_branch
      %24 = sbr.rel (0) target = $region25
    $region24: #{area_preserving_nn_forward.1} parent=1 // pred_region
      _
    $region25: #{area_preserving_nn_forward.1} parent=1 // pred_fallthru
      _
    // Predicated region
    $region26: #{area_preserving_nn_forward.1} parent=1 // pred_check
      _
    $region27: #{area_preserving_nn_forward.1} parent=1 // pred_check_branch
      %26 = sbr.rel (0) target = $region29
    $region28: #{area_preserving_nn_forward.1} parent=1 // pred_region
      _
    $region29: #{area_preserving_nn_forward.1} parent=1 // pred_fallthru
      _
    %v27 = vld [vmem:[%s0] sm:$0x1]
    %v28 = vld [vmem:[%s0 + $0x1] sm:$0x1]
    %v29 = vld [vmem:[%s1] sm:$0xff]
    %v30 = vld [vmem:[%s1 + $0x8] sm:$0xff]
    %v31 = vld [vmem:[%s1 + $0x10] sm:$0xff]
    %v32 = vld [vmem:[%s1 + $0x18] sm:$0xff]
    %v33 = vld [vmem:[%s1 + $0x20] sm:$0xff]
    %v34 = vld [vmem:[%s1 + $0x28] sm:$0xff]
    %v35 = vld [vmem:[%s1 + $0x30] sm:$0xff]
    %v36 = vld [vmem:[%s1 + $0x38] sm:$0xff]
    %38 = vset.pattern.permute.xlu0 0
    %39 = vperm.xlu0 %38, %v29
    %v40 = vpop.permute.xlu0 %39
    %43 = vset.pattern.permute.xlu0 0
    %44 = vperm.xlu0 %43, %v30
    %v45 = vpop.permute.xlu0 %44
    %48 = vset.pattern.permute.xlu0 0
    %49 = vperm.xlu0 %48, %v31
    %v50 = vpop.permute.xlu0 %49
    %53 = vset.pattern.permute.xlu0 0
    %54 = vperm.xlu0 %53, %v32
    %v55 = vpop.permute.xlu0 %54
    %58 = vset.pattern.permute.xlu0 0
    %59 = vperm.xlu0 %58, %v33
    %v60 = vpop.permute.xlu0 %59
    %63 = vset.pattern.permute.xlu0 0
    %64 = vperm.xlu0 %63, %v34
    %v65 = vpop.permute.xlu0 %64
    %68 = vset.pattern.permute.xlu0 0
    %69 = vperm.xlu0 %68, %v35
    %v70 = vpop.permute.xlu0 %69
    %73 = vset.pattern.permute.xlu0 0
    %74 = vperm.xlu0 %73, %v36
    %v75 = vpop.permute.xlu0 %74
    %v77 = vperm.slane %v27, 0
    %v78 = vmul.f32 %v40, %v77
    %v79 = vmul.f32 %v45, %v77
    %v80 = vmul.f32 %v50, %v77
    %v81 = vmul.f32 %v55, %v77
    %v82 = vmul.f32 %v60, %v77
    %v83 = vmul.f32 %v65, %v77
    %v84 = vmul.f32 %v70, %v77
    %v85 = vmul.f32 %v75, %v77
    %86 = vset.pattern.permute.xlu0 1
    %87 = vperm.xlu0 %86, %v29
    %v88 = vpop.permute.xlu0 %87
    %90 = vset.pattern.permute.xlu0 1
    %91 = vperm.xlu0 %90, %v30
    %v92 = vpop.permute.xlu0 %91
    %94 = vset.pattern.permute.xlu0 1
    %95 = vperm.xlu0 %94, %v31
    %v96 = vpop.permute.xlu0 %95
    %98 = vset.pattern.permute.xlu0 1
    %99 = vperm.xlu0 %98, %v32
    %v100 = vpop.permute.xlu0 %99
    %102 = vset.pattern.permute.xlu0 1
    %103 = vperm.xlu0 %102, %v33
    %v104 = vpop.permute.xlu0 %103
    %106 = vset.pattern.permute.xlu0 1
    %107 = vperm.xlu0 %106, %v34
    %v108 = vpop.permute.xlu0 %107
    %110 = vset.pattern.permute.xlu0 1
    %111 = vperm.xlu0 %110, %v35
    %v112 = vpop.permute.xlu0 %111
    %114 = vset.pattern.permute.xlu0 1
    %115 = vperm.xlu0 %114, %v36
    %v116 = vpop.permute.xlu0 %115
    %v118 = vperm.slane %v28, 0
    %v119 = vmul.f32 %v88, %v118
    %v120 = vmul.f32 %v92, %v118
    %v121 = vmul.f32 %v96, %v118
    %v122 = vmul.f32 %v100, %v118
    %v123 = vmul.f32 %v104, %v118
    %v124 = vmul.f32 %v108, %v118
    %v125 = vmul.f32 %v112, %v118
    %v126 = vmul.f32 %v116, %v118
    %v127 = vadd.f32 %v78, %v119
    %v128 = vadd.f32 %v79, %v120
    %v129 = vadd.f32 %v80, %v121
    %v130 = vadd.f32 %v81, %v122
    %v131 = vadd.f32 %v82, %v123
    %v132 = vadd.f32 %v83, %v124
    %v133 = vadd.f32 %v84, %v125
    %v134 = vadd.f32 %v85, %v126
    %v135 = vld [vmem:[%s2] sm:$0xff]
    %v136 = vld [vmem:[%s2 + $0x8] sm:$0xff]
    %v137 = vld [vmem:[%s2 + $0x10] sm:$0xff]
    %v138 = vld [vmem:[%s2 + $0x18] sm:$0xff]
    %v139 = vld [vmem:[%s2 + $0x20] sm:$0xff]
    %v140 = vld [vmem:[%s2 + $0x28] sm:$0xff]
    %v141 = vld [vmem:[%s2 + $0x30] sm:$0xff]
    %v142 = vld [vmem:[%s2 + $0x38] sm:$0xff]
    %144 = vset.pattern.permute.xlu0 0
    %145 = vperm.xlu0 %144, %v135
    %v146 = vpop.permute.xlu0 %145
    %149 = vset.pattern.permute.xlu0 0
    %150 = vperm.xlu0 %149, %v136
    %v151 = vpop.permute.xlu0 %150
    %154 = vset.pattern.permute.xlu0 0
    %155 = vperm.xlu0 %154, %v137
    %v156 = vpop.permute.xlu0 %155
    %159 = vset.pattern.permute.xlu0 0
    %160 = vperm.xlu0 %159, %v138
    %v161 = vpop.permute.xlu0 %160
    %164 = vset.pattern.permute.xlu0 0
    %165 = vperm.xlu0 %164, %v139
    %v166 = vpop.permute.xlu0 %165
    %169 = vset.pattern.permute.xlu0 0
    %170 = vperm.xlu0 %169, %v140
    %v171 = vpop.permute.xlu0 %170
    %174 = vset.pattern.permute.xlu0 0
    %175 = vperm.xlu0 %174, %v141
    %v176 = vpop.permute.xlu0 %175
    %179 = vset.pattern.permute.xlu0 0
    %180 = vperm.xlu0 %179, %v142
    %v181 = vpop.permute.xlu0 %180
    %v183 = vadd.f32 %v127, %v146
    %v184 = vadd.f32 %v128, %v151
    %v185 = vadd.f32 %v129, %v156
    %v186 = vadd.f32 %v130, %v161
    %v187 = vadd.f32 %v131, %v166
    %v188 = vadd.f32 %v132, %v171
    %v189 = vadd.f32 %v133, %v176
    %v190 = vadd.f32 %v134, %v181
    %v191 = vtanh.pop %v183
    %v192 = vtanh.pop %v184
    %v193 = vtanh.pop %v185
    %v194 = vtanh.pop %v186
    %v195 = vtanh.pop %v187
    %v196 = vtanh.pop %v188
    %v197 = vtanh.pop %v189
    %v198 = vtanh.pop %v190
    %v199 = vld [vmem:[%s3] sm:$0xff]
    %v200 = vld [vmem:[%s3 + $0x8] sm:$0xff]
    %v201 = vld [vmem:[%s3 + $0x10] sm:$0xff]
    %v202 = vld [vmem:[%s3 + $0x18] sm:$0xff]
    %v203 = vld [vmem:[%s3 + $0x20] sm:$0xff]
    %v204 = vld [vmem:[%s3 + $0x28] sm:$0xff]
    %v205 = vld [vmem:[%s3 + $0x30] sm:$0xff]
    %v206 = vld [vmem:[%s3 + $0x38] sm:$0xff]
    %v207 = vld [vmem:[%s4] sm:$0xff]
    %v208 = vld [vmem:[%s4 + $0x8] sm:$0xff]
    %v209 = vld [vmem:[%s4 + $0x10] sm:$0xff]
    %v210 = vld [vmem:[%s4 + $0x18] sm:$0xff]
    %v211 = vld [vmem:[%s4 + $0x20] sm:$0xff]
    %v212 = vld [vmem:[%s4 + $0x28] sm:$0xff]
    %v213 = vld [vmem:[%s4 + $0x30] sm:$0xff]
    %v214 = vld [vmem:[%s4 + $0x38] sm:$0xff]
    %216 = vset.pattern.permute.xlu0 0
    %217 = vperm.xlu0 %216, %v207
    %v218 = vpop.permute.xlu0 %217
    %221 = vset.pattern.permute.xlu0 0
    %222 = vperm.xlu0 %221, %v208
    %v223 = vpop.permute.xlu0 %222
    %226 = vset.pattern.permute.xlu0 0
    %227 = vperm.xlu0 %226, %v209
    %v228 = vpop.permute.xlu0 %227
    %231 = vset.pattern.permute.xlu0 0
    %232 = vperm.xlu0 %231, %v210
    %v233 = vpop.permute.xlu0 %232
    %236 = vset.pattern.permute.xlu0 0
    %237 = vperm.xlu0 %236, %v211
    %v238 = vpop.permute.xlu0 %237
    %241 = vset.pattern.permute.xlu0 0
    %242 = vperm.xlu0 %241, %v212
    %v243 = vpop.permute.xlu0 %242
    %246 = vset.pattern.permute.xlu0 0
    %247 = vperm.xlu0 %246, %v213
    %v248 = vpop.permute.xlu0 %247
    %251 = vset.pattern.permute.xlu0 0
    %252 = vperm.xlu0 %251, %v214
    %v253 = vpop.permute.xlu0 %252
    %vm255 = vcmask 523264
    %v257 = vsel %vm255, %v199, 0
    %v260 = vsel %vm255, %v200, 0
    %v263 = vsel %vm255, %v201, 0
    %v266 = vsel %vm255, %v202, 0
    %v269 = vsel %vm255, %v203, 0
    %v272 = vsel %vm255, %v204, 0
    %v275 = vsel %vm255, %v205, 0
    %v278 = vsel %vm255, %v206, 0
    %280 = vmatpush.msra.mxu0 0.0
    %281 = vmatpush.msra.mxu0 0.0
    %282 = vmatpush.msra.mxu0 0.0
    %283 = vmatpush.msra.mxu0 0.0
    %284 = vmatpush.msra.mxu0 0.0
    %285 = vmatpush.msra.mxu0 0.0
    %286 = vmatpush.msra.mxu0 0.0
    %287 = vmatpush.msra.mxu0 0.0
    %288 = vmatpush.msra.mxu0 %v198
    %289 = vmatpush.msra.mxu0 %v197
    %290 = vmatpush.msra.mxu0 %v196
    %291 = vmatpush.msra.mxu0 %v195
    %292 = vmatpush.msra.mxu0 %v194
    %293 = vmatpush.msra.mxu0 %v193
    %294 = vmatpush.msra.mxu0 %v192
    %295 = vmatpush.msra.mxu0 %v191
    %296 = vmatmul.f32.gmra.mxu0 %v257
    %v297 = vpop.f32.mrf.mxu0
    %v298 = vadd.f32 %v218, %v297
    %299 = vmatmul.f32.gmra.mxu0 %v260
    %v300 = vpop.f32.mrf.mxu0
    %v301 = vadd.f32 %v223, %v300
    %302 = vmatmul.f32.gmra.mxu0 %v263
    %v303 = vpop.f32.mrf.mxu0
    %v304 = vadd.f32 %v228, %v303
    %305 = vmatmul.f32.gmra.mxu0 %v266
    %v306 = vpop.f32.mrf.mxu0
    %v307 = vadd.f32 %v233, %v306
    %308 = vmatmul.f32.gmra.mxu0 %v269
    %v309 = vpop.f32.mrf.mxu0
    %v310 = vadd.f32 %v238, %v309
    %311 = vmatmul.f32.gmra.mxu0 %v272
    %v312 = vpop.f32.mrf.mxu0
    %v313 = vadd.f32 %v243, %v312
    %314 = vmatmul.f32.gmra.mxu0 %v275
    %v315 = vpop.f32.mrf.mxu0
    %v316 = vadd.f32 %v248, %v315
    %317 = vmatmul.f32.gmra.mxu0 %v278
    %v318 = vpop.f32.mrf.mxu0
    %v319 = vadd.f32 %v253, %v318
    %320 = vdwg.mxu0
    %v321 = vtanh.pop %v298
    %v322 = vtanh.pop %v301
    %v323 = vtanh.pop %v304
    %v324 = vtanh.pop %v307
    %v325 = vtanh.pop %v310
    %v326 = vtanh.pop %v313
    %v327 = vtanh.pop %v316
    %v328 = vtanh.pop %v319
    %v329 = vld [vmem:[%s5] sm:$0x3]
    %v330 = vld [vmem:[%s6] sm:$0x3]
    %332 = vset.pattern.permute.xlu0 0
    %333 = vperm.xlu0 %332, %v330
    %v334 = vpop.permute.xlu0 %333
    %v337 = vsel %vm255, %v329, 0
    %339 = vmatpush.msra.mxu0 0.0
    %340 = vmatpush.msra.mxu0 0.0
    %341 = vmatpush.msra.mxu0 0.0
    %342 = vmatpush.msra.mxu0 0.0
    %343 = vmatpush.msra.mxu0 0.0
    %344 = vmatpush.msra.mxu0 0.0
    %345 = vmatpush.msra.mxu0 0.0
    %346 = vmatpush.msra.mxu0 0.0
    %347 = vmatpush.msra.mxu0 %v328
    %348 = vmatpush.msra.mxu0 %v327
    %349 = vmatpush.msra.mxu0 %v326
    %350 = vmatpush.msra.mxu0 %v325
    %351 = vmatpush.msra.mxu0 %v324
    %352 = vmatpush.msra.mxu0 %v323
    %353 = vmatpush.msra.mxu0 %v322
    %354 = vmatpush.msra.mxu0 %v321
    %355 = vmatmul.f32.gmra.mxu0 %v337
    %v356 = vpop.f32.mrf.mxu0
    %v357 = vadd.f32 %v334, %v356
    %358 = vdwg.mxu0
    %359 = vst [vmem:[#allocation2] sm:$0x3] %v357
    // Predicated region
    $region30: #{area_preserving_nn_forward.1} parent=1 // pred_check
      _
    $region31: #{area_preserving_nn_forward.1} parent=1 // pred_check_branch
      %361 = sbr.rel (0) target = $region33
    $region32: #{area_preserving_nn_forward.1} parent=1 // pred_region
      %363 = vsyncadd [#allocation3], 0
      %s365 = sshll.u32 [#allocation2], 4
      %s366 = int_to_ptr.vmem [resolvable:$true] %s365
      %s367 = sshll.u32 %s7, 4
      %s368 = int_to_ptr.hbm [resolvable:$true] %s367
      %370 = dma.vmem_to_hbm [thread:$0]  %s366, 32, %s368, [#allocation3]
    $region33: #{area_preserving_nn_forward.1} parent=1 // pred_fallthru
      _
    // Predicated region
    $region34: #{area_preserving_nn_forward.1} parent=1 // pred_check
      _
    $region35: #{area_preserving_nn_forward.1} parent=1 // pred_check_branch
      %372 = sbr.rel (0) target = $region37
    $region36: #{area_preserving_nn_forward.1} parent=1 // pred_region
      %374 = dma.done [#allocation3], 32
    $region37: #{area_preserving_nn_forward.1} parent=1 // pred_fallthru
      _
    %375 = vsyncpa [#allocation3], 1

</llo_original>
